<compile_context>
chip_gen: v5e
topology: v5e:2x2
jax: 0.10.0
libtpu: 0.0.40
codegen_flags: <defaults>
</compile_context>

<pallas_src>
import math
import functools

import jax
import jax.numpy as jnp
from jax import lax
from jax.experimental import pallas as pl
from jax.experimental.pallas import tpu as pltpu

_SQRT2 = math.sqrt(2.0)
_NEG_SLOPE = 0.2
_EPS = 1e-8


# --------------------------------------------------------------------------- kernels

def _kernel_full_shift(side_ref, x_ref, shift_ref, o_ref):
    """side = (tm, 3) f32 [a1, a2, bias]; x/shift/out = (tm, tn)."""
    a1 = side_ref[:, 0:1]
    a2 = side_ref[:, 1:2]
    b = side_ref[:, 2:3]
    y = (x_ref[...].astype(jnp.float32) * a1
         + shift_ref[...].astype(jnp.float32) * a2
         + b)
    o_ref[...] = jnp.where(y >= 0.0, y * _SQRT2, y * (_NEG_SLOPE * _SQRT2)).astype(o_ref.dtype)


def _kernel_row_shift(side_ref, x_ref, o_ref):
    """side = (tm, 2) f32 [a1, shift*a2 + bias]; x/out = (tm, tn)."""
    a1 = side_ref[:, 0:1]
    off = side_ref[:, 1:2]
    y = x_ref[...].astype(jnp.float32) * a1 + off
    o_ref[...] = jnp.where(y >= 0.0, y * _SQRT2, y * (_NEG_SLOPE * _SQRT2)).astype(o_ref.dtype)


# --------------------------------------------------------------------------- budgeting

def _vmem_budget_bytes():
    """Generation-aware VMEM budget: (vmem_limit_bytes, streaming-tile budget)."""
    cap = 64 << 20  # conservative default (v7x per-TC)
    try:
        info = pltpu.get_tpu_info()
        c = getattr(info, "vmem_capacity_bytes", None)
        if c:
            cap = int(c)
    except Exception:
        pass
    vmem_limit = int(cap * 0.75)            # 128 MiB -> 96 MiB (v5e/v6e), 64 MiB -> 48 MiB (v7x)
    tile_budget = int(vmem_limit * 0.70)    # headroom for side input / compiler scratch
    return vmem_limit, tile_budget


def _choose_tiles(rows, n, stream_bytes_per_elem, max_stream_itemsize, tile_budget_bytes):
    """Pick (tm, tn) so the double-buffered footprint of all streams fits the budget."""
    bufs = 2
    # max elements per tile position across all streaming arrays
    max_elems = max(8 * 128, tile_budget_bytes // max(1, stream_bytes_per_elem * bufs))
    # keep each single buffer within the ~8 MiB streaming sweet spot
    max_elems = min(max_elems, (8 << 20) // max(1, max_stream_itemsize))

    # Column tile: full n if an 8-row slab fits, else a lane-dense multiple of 128.
    if n <= 128 or n * 8 <= max_elems:
        tn = n
    else:
        tn = max(128, ((max_elems // 8) // 128) * 128)
        tn = min(tn, ((n + 127) // 128) * 128)

    # Row tile: multiple of 8 (or the full row extent).
    tm_cap = max(8, ((max_elems // max(tn, 1)) // 8) * 8)
    tm = rows if rows <= tm_cap else tm_cap

    # Ensure grid >= 2 for non-trivial sizes (pipelining + v7x megacore sharding).
    total_bytes = rows * n * stream_bytes_per_elem
    if tm >= rows and tn >= n and total_bytes > (4 << 20):
        if rows >= 16:
            tm = max(8, ((-(-rows // 2)) + 7) // 8 * 8)
            if tm >= rows:
                tm = rows
        elif n >= 256:
            tn = max(128, ((n // 2) // 128) * 128)
    return tm, tn


# --------------------------------------------------------------------------- wrapper

def style_layer_norm_scale_shift(x, shift, scale1, scale2, bias):
    """x: (B, C, H, W); shift: (B, C, H, W) or (B, C[,1,1]); scale1, scale2: (B, C); bias: (C,)."""
    B, C, H, W = x.shape
    rows = B * C
    n = H * W
    out_dtype = x.dtype
    itemsize_x = jnp.dtype(x.dtype).itemsize
    itemsize_out = jnp.dtype(out_dtype).itemsize

    # --- per-row style normalization (O(B*C); rsqrt done once in the wrapper) ---
    s1 = scale1.reshape(rows).astype(jnp.float32)
    s2 = scale2.reshape(rows).astype(jnp.float32)
    inv = lax.rsqrt(s1 * s1 + s2 * s2 + _EPS)
    a1 = s1 * inv
    a2 = s2 * inv
    b_rows = jnp.broadcast_to(bias.reshape(1, C).astype(jnp.float32), (B, C)).reshape(rows)

    # --- decide whether shift is a full spatial stream or a per-row scalar ---
    shift_is_row = (shift.shape == (B, C)) or (shift.shape == (B, C, 1, 1))

    x2 = x.reshape(rows, n)

    vmem_limit, tile_budget = _vmem_budget_bytes()

    if shift_is_row:
        shift_rows = shift.reshape(rows).astype(jnp.float32)
        side = jnp.stack([a1, shift_rows * a2 + b_rows], axis=1)        # (rows, 2)
        stream_bytes = itemsize_x + itemsize_out
        max_item = max(itemsize_x, itemsize_out)
        tm, tn = _choose_tiles(rows, n, stream_bytes, max_item, tile_budget)
        grid = (pl.cdiv(rows, tm), pl.cdiv(n, tn))
        cost = pl.CostEstimate(
            flops=4 * rows * n, transcendentals=rows,
            bytes_accessed=rows * n * (itemsize_x + itemsize_out) + rows * 2 * 4)
        out2 = pl.pallas_call(
            _kernel_row_shift,
            out_shape=jax.ShapeDtypeStruct((rows, n), out_dtype),
            grid=grid,
            in_specs=[
                pl.BlockSpec((tm, 2), lambda i, j: (i, 0)),             # packed per-row side
                pl.BlockSpec((tm, tn), lambda i, j: (i, j)),            # x tile
            ],
            out_specs=pl.BlockSpec((tm, tn), lambda i, j: (i, j)),
            compiler_params=pltpu.CompilerParams(
                dimension_semantics=("parallel", "parallel"),
                vmem_limit_bytes=vmem_limit,
            ),
            cost_estimate=cost,
        )(side, x2)
    else:
        if shift.shape != x.shape:
            shift = jnp.broadcast_to(shift, x.shape)
        shift2 = shift.reshape(rows, n)
        itemsize_sh = jnp.dtype(shift2.dtype).itemsize
        side = jnp.stack([a1, a2, b_rows], axis=1)                      # (rows, 3)
        stream_bytes = itemsize_x + itemsize_sh + itemsize_out
        max_item = max(itemsize_x, itemsize_sh, itemsize_out)
        tm, tn = _choose_tiles(rows, n, stream_bytes, max_item, tile_budget)
        grid = (pl.cdiv(rows, tm), pl.cdiv(n, tn))
        cost = pl.CostEstimate(
            flops=6 * rows * n, transcendentals=rows,
            bytes_accessed=rows * n * stream_bytes + rows * 3 * 4)
        out2 = pl.pallas_call(
            _kernel_full_shift,
            out_shape=jax.ShapeDtypeStruct((rows, n), out_dtype),
            grid=grid,
            in_specs=[
                pl.BlockSpec((tm, 3), lambda i, j: (i, 0)),             # packed per-row side
                pl.BlockSpec((tm, tn), lambda i, j: (i, j)),            # x tile
                pl.BlockSpec((tm, tn), lambda i, j: (i, j)),            # shift tile
            ],
            out_specs=pl.BlockSpec((tm, tn), lambda i, j: (i, j)),
            compiler_params=pltpu.CompilerParams(
                dimension_semantics=("parallel", "parallel"),
                vmem_limit_bytes=vmem_limit,
            ),
            cost_estimate=cost,
        )(side, x2, shift2)

    return out2.reshape(B, C, H, W)


# --------------------------------------------------------------------------- test

if __name__ == "__main__":
    key = jax.random.PRNGKey(0)
    B, C, H, W = 2, 4, 16, 16

    kx, ksh, ks1, ks2, kb = jax.random.split(key, 5)
    x = jax.random.normal(kx, (B, C, H, W), dtype=jnp.float32)
    shift = jax.random.normal(ksh, (B, C, H, W), dtype=jnp.float32)
    scale1 = jax.random.normal(ks1, (B, C), dtype=jnp.float32)
    scale2 = jax.random.normal(ks2, (B, C), dtype=jnp.float32)
    # FusedLeakyReLU bias is a learnable (C,) parameter (zero-init); random here so
    # the bias path is exercised.
    bias = 0.1 * jax.random.normal(kb, (C,), dtype=jnp.float32)

    # Pure-JAX reference (mirrors Norm2Scale + scale/shift + FusedLeakyReLU).
    norm = scale1 ** 2 + scale2 ** 2 + _EPS
    s1n = scale1 * lax.rsqrt(norm)
    s2n = scale2 * lax.rsqrt(norm)
    ref = x * s1n[:, :, None, None] + shift * s2n[:, :, None, None]
    ref = ref + bias[None, :, None, None]
    ref = jnp.where(ref >= 0, ref, _NEG_SLOPE * ref) * _SQRT2

    # Full-shift-stream path.
    out = style_layer_norm_scale_shift(x, shift, scale1, scale2, bias)
    jax.block_until_ready(out)
    assert out.shape == (B, C, H, W)
    assert jnp.allclose(out, ref, atol=1e-5, rtol=1e-5), float(jnp.max(jnp.abs(out - ref)))

    # Per-row shift fast path (spatially broadcast shift).
    shift_row = jax.random.normal(ksh, (B, C), dtype=jnp.float32)
    out_r = style_layer_norm_scale_shift(x, shift_row, scale1, scale2, bias)
    jax.block_until_ready(out_r)
    ref_r = x * s1n[:, :, None, None] + shift_row[:, :, None, None] * s2n[:, :, None, None]
    ref_r = ref_r + bias[None, :, None, None]
    ref_r = jnp.where(ref_r >= 0, ref_r, _NEG_SLOPE * ref_r) * _SQRT2
    assert jnp.allclose(out_r, ref_r, atol=1e-5, rtol=1e-5), float(jnp.max(jnp.abs(out_r - ref_r)))

    print("KERNEL_OK")
</pallas_src>

<mosaic_0001>
module attributes {stable_mosaic.version = 11 : i64} {
  func.func @_kernel_full_shift(%arg0: i32, %arg1: i32, %arg2: memref<8x3xf32, #tpu.memory_space<vmem>>, %arg3: memref<8x256xf32, #tpu.memory_space<vmem>>, %arg4: memref<8x256xf32, #tpu.memory_space<vmem>>, %arg5: memref<8x256xf32, #tpu.memory_space<vmem>>) attributes {dimension_semantics = [#tpu.dimension_semantics<parallel>, #tpu.dimension_semantics<parallel>], iteration_bounds = array<i64: 1, 1>, scalar_prefetch = 0 : i64, scratch_operands = 0 : i64, tpu.core_type = #tpu.core_type<tc>, window_params = [{transform_indices = @transform_0, window_bounds = array<i64: 8, 3>}, {transform_indices = @transform_1, window_bounds = array<i64: 8, 256>}, {transform_indices = @transform_2, window_bounds = array<i64: 8, 256>}, {transform_indices = @transform_3, window_bounds = array<i64: 8, 256>}]} {
    %c0 = arith.constant 0 : index
    %c0_0 = arith.constant 0 : index
    %0 = vector.load %arg2[%c0, %c0_0] : memref<8x3xf32, #tpu.memory_space<vmem>>, vector<8x1xf32>
    %c0_1 = arith.constant 0 : index
    %c1 = arith.constant 1 : index
    %1 = vector.load %arg2[%c0_1, %c1] : memref<8x3xf32, #tpu.memory_space<vmem>>, vector<8x1xf32>
    %c0_2 = arith.constant 0 : index
    %c2 = arith.constant 2 : index
    %2 = vector.load %arg2[%c0_2, %c2] : memref<8x3xf32, #tpu.memory_space<vmem>>, vector<8x1xf32>
    %c0_3 = arith.constant 0 : index
    %c0_4 = arith.constant 0 : index
    %3 = vector.load %arg3[%c0_3, %c0_4] : memref<8x256xf32, #tpu.memory_space<vmem>>, vector<8x256xf32>
    %4 = vector.broadcast %0 : vector<8x1xf32> to vector<8x256xf32>
    %5 = arith.mulf %3, %4 : vector<8x256xf32>
    %c0_5 = arith.constant 0 : index
    %c0_6 = arith.constant 0 : index
    %6 = vector.load %arg4[%c0_5, %c0_6] : memref<8x256xf32, #tpu.memory_space<vmem>>, vector<8x256xf32>
    %7 = vector.broadcast %1 : vector<8x1xf32> to vector<8x256xf32>
    %8 = arith.mulf %6, %7 : vector<8x256xf32>
    %9 = arith.addf %5, %8 : vector<8x256xf32>
    %10 = vector.broadcast %2 : vector<8x1xf32> to vector<8x256xf32>
    %11 = arith.addf %9, %10 : vector<8x256xf32>
    %cst = arith.constant 0.000000e+00 : f32
    %12 = vector.broadcast %cst : f32 to vector<8x256xf32>
    %13 = arith.cmpf oge, %11, %12 : vector<8x256xf32>
    %cst_7 = arith.constant 1.41421354 : f32
    %14 = vector.broadcast %cst_7 : f32 to vector<8x256xf32>
    %15 = arith.mulf %11, %14 : vector<8x256xf32>
    %cst_8 = arith.constant 0.282842726 : f32
    %16 = vector.broadcast %cst_8 : f32 to vector<8x256xf32>
    %17 = arith.mulf %11, %16 : vector<8x256xf32>
    %18 = arith.select %13, %15, %17 : vector<8x256xi1>, vector<8x256xf32>
    %c0_9 = arith.constant 0 : index
    %c0_10 = arith.constant 0 : index
    %19 = vector.load %arg5[%c0_9, %c0_10] : memref<8x256xf32, #tpu.memory_space<vmem>>, vector<8x256xf32>
    tpu.vector_store %arg5[%c0_9, %c0_10], %18 {strides = array<i32>} : memref<8x256xf32, #tpu.memory_space<vmem>>, vector<8x256xf32>,
    return
  }
  func.func @transform_0(%arg0: i32, %arg1: i32) -> (i32, i32) {
    %c0_i32 = arith.constant 0 : i32
    %c0_i32_0 = arith.constant 0 : i32
    return %arg0, %c0_i32 : i32, i32
  }
  func.func @transform_1(%arg0: i32, %arg1: i32) -> (i32, i32) {
    %c0_i32 = arith.constant 0 : i32
    return %arg0, %arg1 : i32, i32
  }
  func.func @transform_2(%arg0: i32, %arg1: i32) -> (i32, i32) {
    %c0_i32 = arith.constant 0 : i32
    return %arg0, %arg1 : i32, i32
  }
  func.func @transform_3(%arg0: i32, %arg1: i32) -> (i32, i32) {
    %c0_i32 = arith.constant 0 : i32
    return %arg0, %arg1 : i32, i32
  }
}

</mosaic_0001>

<llo_original>
// kernel: tpu_custom_call.1
$region0: #{tpu_custom_call.1}
  #allocation0 [shape = 'u32[]', space=smem, size = 0x4, offset = 0x4, fixed_abs, tag = 'smem constant byte address 0x4 - core index']
  #allocation1 [shape = 'u32[72,128]{1,0:T(1,128)}', space=vmem, size = 0x9000, scoped, tag = 'internal scratch']
  %s0 = inlined_call_operand.vmem [shape: f32[8,3], index: 0, kind: input, shape index: {}]
  %s1 = inlined_call_operand.hbm [shape: f32[8,256], index: 1, kind: input, shape index: {}]
  %s2 = inlined_call_operand.hbm [shape: f32[8,256], index: 2, kind: input, shape index: {}]
  %s3 = inlined_call_operand.hbm [shape: f32[8,256], index: 3, kind: output, shape index: {}]
  %s4 = sld [smem:[#allocation0]]
  $region30: #{tpu_custom_call.1} parent=0
    _
  %s6 = ssub.s32 1, %s4
  %s7 = scalar_select 0, %s6, %s4
  $region1: #{tpu_custom_call.1} parent=0
    #allocation2 [shape = 'u8[8192]{0}', space=vmem, size = 0x2000, scoped, tag = 'input window, operand 1, single buffered']
    #allocation3 [shape = 's32[1]{0}', space=sflag, size = 0x4, scoped, tag = 'scoped memory for tpu_custom_call.1']
    #allocation4 [shape = 's32[1]{0}', space=sflag, size = 0x4, scoped, tag = 'scoped memory for tpu_custom_call.1']
    #allocation5 [shape = 'u8[8192]{0}', space=vmem, size = 0x2000, scoped, tag = 'input window, operand 2, single buffered']
    #allocation6 [shape = 's32[1]{0}', space=sflag, size = 0x4, scoped, tag = 'scoped memory for tpu_custom_call.1']
    #allocation7 [shape = 'u8[8192]{0}', space=vmem, size = 0x2000, scoped, tag = 'output window, operand 0, single buffered']
    %8 = vsyncpa [#allocation3], 0
    %9 = vsyncpa [#allocation6], 0
    %10 = vsyncpa [#allocation4], 0
    // Predicated region
    $region2: #{tpu_custom_call.1} parent=1 // pred_check
      _
    $region3: #{tpu_custom_call.1} parent=1 // pred_check_branch
      %12 = sbr.rel (0) target = $region5
    $region4: #{tpu_custom_call.1} parent=1 // pred_region
      _
    $region5: #{tpu_custom_call.1} parent=1 // pred_fallthru
      _
    // Predicated region
    $region6: #{tpu_custom_call.1} parent=1 // pred_check
      _
    $region7: #{tpu_custom_call.1} parent=1 // pred_check_branch
      %14 = sbr.rel (0) target = $region9
    $region8: #{tpu_custom_call.1} parent=1 // pred_region
      %16 = vsyncadd [#allocation3], 0
      %s18 = sshll.u32 %s1, 4
      %s19 = int_to_ptr.hbm [resolvable:$true] %s18
      %s20 = sshll.u32 [#allocation2], 4
      %s21 = int_to_ptr.vmem [resolvable:$true] %s20
      %23 = dma.hbm_to_vmem [thread:$0]  %s19, 256, %s21, [#allocation3]
    $region9: #{tpu_custom_call.1} parent=1 // pred_fallthru
      _
    // Predicated region
    $region10: #{tpu_custom_call.1} parent=1 // pred_check
      _
    $region11: #{tpu_custom_call.1} parent=1 // pred_check_branch
      %25 = sbr.rel (0) target = $region13
    $region12: #{tpu_custom_call.1} parent=1 // pred_region
      %27 = vsyncadd [#allocation6], 0
      %s29 = sshll.u32 %s2, 4
      %s30 = int_to_ptr.hbm [resolvable:$true] %s29
      %s31 = sshll.u32 [#allocation5], 4
      %s32 = int_to_ptr.vmem [resolvable:$true] %s31
      %34 = dma.hbm_to_vmem [thread:$0]  %s30, 256, %s32, [#allocation6]
    $region13: #{tpu_custom_call.1} parent=1 // pred_fallthru
      _
    // Predicated region
    $region14: #{tpu_custom_call.1} parent=1 // pred_check
      _
    $region15: #{tpu_custom_call.1} parent=1 // pred_check_branch
      %36 = sbr.rel (0) target = $region17
    $region16: #{tpu_custom_call.1} parent=1 // pred_region
      %38 = dma.done [#allocation3], 256
    $region17: #{tpu_custom_call.1} parent=1 // pred_fallthru
      _
    // Predicated region
    $region18: #{tpu_custom_call.1} parent=1 // pred_check
      _
    $region19: #{tpu_custom_call.1} parent=1 // pred_check_branch
      %40 = sbr.rel (0) target = $region21
    $region20: #{tpu_custom_call.1} parent=1 // pred_region
      %42 = dma.done [#allocation6], 256
    $region21: #{tpu_custom_call.1} parent=1 // pred_fallthru
      _
    %v43 = vld [vmem:[%s0] sm:$0xff]
    %v44 = vld [vmem:[#allocation2] sm:$0xff]
    %v45 = vld [vmem:[#allocation2 + $0x8] sm:$0xff]
    %47 = vset.pattern.permute.xlu0 0
    %48 = vperm.xlu0 %47, %v43
    %v49 = vpop.permute.xlu0 %48
    %v51 = vmul.f32 %v44, %v49
    %v52 = vmul.f32 %v45, %v49
    %v53 = vld [vmem:[#allocation5] sm:$0xff]
    %v54 = vld [vmem:[#allocation5 + $0x8] sm:$0xff]
    %55 = vset.pattern.permute.xlu0 1
    %56 = vperm.xlu0 %55, %v43
    %v57 = vpop.permute.xlu0 %56
    %v59 = vmul.f32 %v53, %v57
    %v60 = vmul.f32 %v54, %v57
    %v61 = vadd.f32 %v51, %v59
    %v62 = vadd.f32 %v52, %v60
    %63 = vset.pattern.permute.xlu0 2
    %64 = vperm.xlu0 %63, %v43
    %v65 = vpop.permute.xlu0 %64
    %v67 = vadd.f32 %v61, %v65
    %v68 = vadd.f32 %v62, %v65
    %vm69 = vcmp.ge.f32.partialorder %v67, 0.0
    %vm70 = vcmp.ge.f32.partialorder %v68, 0.0
    %v71 = vmul.f32 %v67, 1.4142135
    %v72 = vmul.f32 %v68, 1.4142135
    %v73 = vmul.f32 %v67, 0.28284273
    %v74 = vmul.f32 %v68, 0.28284273
    %v75 = vsel %vm69, %v71, %v73
    %v76 = vsel %vm70, %v72, %v74
    %77 = vst [vmem:[#allocation7] sm:$0xff] %v75
    %78 = vst [vmem:[#allocation7 + $0x8] sm:$0xff] %v76
    // Predicated region
    $region22: #{tpu_custom_call.1} parent=1 // pred_check
      _
    $region23: #{tpu_custom_call.1} parent=1 // pred_check_branch
      %80 = sbr.rel (0) target = $region25
    $region24: #{tpu_custom_call.1} parent=1 // pred_region
      %82 = vsyncadd [#allocation4], 0
      %s84 = sshll.u32 [#allocation7], 4
      %s85 = int_to_ptr.vmem [resolvable:$true] %s84
      %s86 = sshll.u32 %s3, 4
      %s87 = int_to_ptr.hbm [resolvable:$true] %s86
      %89 = dma.vmem_to_hbm [thread:$0]  %s85, 256, %s87, [#allocation4]
    $region25: #{tpu_custom_call.1} parent=1 // pred_fallthru
      _
    // Predicated region
    $region26: #{tpu_custom_call.1} parent=1 // pred_check
      _
    $region27: #{tpu_custom_call.1} parent=1 // pred_check_branch
      %91 = sbr.rel (0) target = $region29
    $region28: #{tpu_custom_call.1} parent=1 // pred_region
      %93 = dma.done [#allocation4], 256
    $region29: #{tpu_custom_call.1} parent=1 // pred_fallthru
      _
    %94 = vsyncpa [#allocation3], 1
    %95 = vsyncpa [#allocation6], 1
    %96 = vsyncpa [#allocation4], 1

</llo_original>
